<compile_context>
chip_gen: v7x
topology: tpu7x:2x2x1
jax: 0.10.0
libtpu: 0.0.40
codegen_flags: <defaults>
</compile_context>

<pallas_src>
import functools

import jax
import jax.numpy as jnp
from jax.experimental import pallas as pl
from jax.experimental.pallas import tpu as pltpu


_PHASES = ((0, 0), (0, 1), (1, 0), (1, 1))
_TAPS = ((0, 0), (0, 1), (1, 0), (1, 1))
_VMEM_LIMIT = 40 * 1024 * 1024   # > v5e scoped default, < v7x physical 64 MiB


def _round_up(n, m):
    return max(m, ((n + m - 1) // m) * m)


def _ru8(n):
    return _round_up(n, 8)


def _ruC(n):
    # Channel padding to the bf16 sublane tile (16) keeps in-kernel sublane
    # concatenation / K blocks tile-aligned.
    return _round_up(n, 16)


# ---------------------------------------------------------------------------
# Pallas kernels
# ---------------------------------------------------------------------------
def _convt_bn_kernel(xp_ref, lhs_ref, scale_ref, shift_ref, pmask_ref, smask_ref,
                     out_ref, s1_ref, s2_ref, *, R, L):
    """Fused [BN affine + ReLU] -> ConvTranspose(s=2,p=1,k=4) -> partial BN
    stats, for one batch element.

    xp_ref:   (1, C_pi, (H+3)*(W+2)) bf16 raw (pre-BN) padded previous output.
    lhs_ref:  (M_pad, 9*C_pi) bf16 block-structured weights (phase-major rows).
    scale/shift: (C_pi, 1) f32 BN affine of the *previous* layer.
    pmask_ref: (1, Lp) f32, 1.0 on original (non-pad) pixels.
    smask_ref: (L, 1) f32, 1.0 on valid (non-garbage) output columns.
    """
    # Prologue: previous layer's BN affine + ReLU; re-zero the padding.
    x = xp_ref[0].astype(jnp.float32)
    x = jnp.maximum(x * scale_ref[...] + shift_ref[...], 0.0) * pmask_ref[...]
    x = x.astype(jnp.bfloat16)
    # 9 distinct shifted windows stacked along K -> single MXU matmul.
    rhs = jnp.concatenate(
        [x[:, dr * R + dc: dr * R + dc + L] for dr in range(3) for dc in range(3)],
        axis=0)
    acc = jnp.dot(lhs_ref[...], rhs, preferred_element_type=jnp.float32)
    out_ref[0] = acc.astype(out_ref.dtype)                      # lane-dense store
    # BN partial sums on the MXU (validity-mask column), not XLU reductions.
    mc = smask_ref[...]
    s1_ref[0] = jnp.dot(acc, mc, preferred_element_type=jnp.float32)
    s2_ref[0] = jnp.dot(acc * acc, mc, preferred_element_type=jnp.float32)


def _convt_final_kernel(xp_ref, lhs_ref, scale_ref, shift_ref, pmask_ref, bias_ref,
                        out_ref, *, R, L):
    """Fused [BN affine + ReLU] -> ConvTranspose -> bias + tanh (epilogue)."""
    x = xp_ref[0].astype(jnp.float32)
    x = jnp.maximum(x * scale_ref[...] + shift_ref[...], 0.0) * pmask_ref[...]
    x = x.astype(jnp.bfloat16)
    rhs = jnp.concatenate(
        [x[:, dr * R + dc: dr * R + dc + L] for dr in range(3) for dc in range(3)],
        axis=0)
    acc = jnp.dot(lhs_ref[...], rhs, preferred_element_type=jnp.float32)
    out_ref[0] = jnp.tanh(acc + bias_ref[...]).astype(out_ref.dtype)


def _matmul_kernel(a_ref, b_ref, o_ref):
    o_ref[...] = jnp.dot(a_ref[...], b_ref[...],
                         preferred_element_type=jnp.float32).astype(o_ref.dtype)


# ---------------------------------------------------------------------------
# Host-side helpers
# ---------------------------------------------------------------------------
def _pad_valid_mask(H, W):
    R = W + 2
    Lp = (H + 3) * R
    idx = jnp.arange(Lp, dtype=jnp.int32)
    r = idx // R
    c = idx % R
    m = (r >= 1) & (r <= H) & (c >= 1) & (c <= W)
    return m.astype(jnp.float32).reshape(1, Lp)


def _valid_col_mask(H, W):
    R = W + 2
    c = jnp.arange(H * R, dtype=jnp.int32) % R
    return (c < W).astype(jnp.float32).reshape(H * R, 1)


def build_stacked_lhs(w_t, C_pi, M_pad):
    """Block-structured LHS (M_pad, 9*C_pi) for the phase/window-stacked matmul.

    Row p*C_out + co (phase-major) x column block widx*C_pi + ci, where
    widx = (rh+a)*3 + (rw+b) and the block is weight[:, :, 3-rh-2a, 3-rw-2b]^T.
    """
    C_in, C_out = w_t.shape[0], w_t.shape[1]
    lhs = jnp.zeros((4, C_out, 9, C_in), jnp.float32)
    for p, (rh, rw) in enumerate(_PHASES):
        for (a, b) in _TAPS:
            widx = (rh + a) * 3 + (rw + b)
            mat = jnp.transpose(w_t[:, :, 3 - rh - 2 * a, 3 - rw - 2 * b])
            lhs = lhs.at[p, :, widx, :].set(mat)
    lhs = lhs.reshape(4 * C_out, 9, C_in)
    lhs = jnp.pad(lhs, ((0, M_pad - 4 * C_out), (0, 0), (0, C_pi - C_in)))
    return lhs.reshape(M_pad, 9 * C_pi).astype(jnp.bfloat16)


def _as_cols(vec, C_pi):
    v = vec.astype(jnp.float32).reshape(-1, 1)
    if v.shape[0] < C_pi:
        v = jnp.pad(v, ((0, C_pi - v.shape[0]), (0, 0)))
    return v


def _bn_scale_shift(s1, s2, count, gamma, beta):
    mean = s1 / count
    var = jnp.maximum(s2 / count - mean * mean, 0.0)            # biased, training
    inv = jax.lax.rsqrt(var + 1e-5)
    scale = gamma.astype(jnp.float32) * inv
    shift = beta.astype(jnp.float32) - mean * scale
    return scale, shift


def phase_to_next_input(y, C, H, W, C_pi_next):
    """(N, 4*C, H*(W+2)) phase-major conv output -> next layer's padded input
    (N, C_pi_next, (2H+3)*(2W+2)).  Single fused XLA reshuffle per layer."""
    N = y.shape[0]
    R = W + 2
    t = y.reshape(N, 2, 2, C, H, R)[..., :W]                    # drop garbage cols
    t = jnp.transpose(t, (0, 3, 4, 1, 5, 2)).reshape(N, C, 2 * H, 2 * W)
    t = jnp.pad(t, ((0, 0), (0, C_pi_next - C), (1, 2), (1, 1)))
    return t.reshape(N, C_pi_next, (2 * H + 3) * (2 * W + 2))


def assemble_final(y, C, H, W):
    """(N, 4*C, H*(W+2)) phase layout -> (N, C, 2H, 2W) channels-first."""
    N = y.shape[0]
    R = W + 2
    t = y.reshape(N, 2, 2, C, H, R)[..., :W]
    t = jnp.transpose(t, (0, 3, 4, 1, 5, 2))
    return t.reshape(N, C, 2 * H, 2 * W)


# ---------------------------------------------------------------------------
# pallas_call wrappers
# ---------------------------------------------------------------------------
def convt_block(xp, lhs, scale_col, shift_col, H, W, *, out_dtype=jnp.bfloat16):
    N, C_pi, Lp = xp.shape
    M_pad = lhs.shape[0]
    R = W + 2
    L = H * R
    assert Lp == (H + 3) * R and lhs.shape[1] == 9 * C_pi
    pmask = _pad_valid_mask(H, W)
    smask = _valid_col_mask(H, W)
    kernel = functools.partial(_convt_bn_kernel, R=R, L=L)
    out_shape = (
        jax.ShapeDtypeStruct((N, M_pad, L), out_dtype),
        jax.ShapeDtypeStruct((N, M_pad, 1), jnp.float32),
        jax.ShapeDtypeStruct((N, M_pad, 1), jnp.float32),
    )
    grid_spec = pltpu.PrefetchScalarGridSpec(
        num_scalar_prefetch=0,
        grid=(N,),
        in_specs=[
            pl.BlockSpec((1, C_pi, Lp), lambda n: (n, 0, 0)),
            pl.BlockSpec((M_pad, 9 * C_pi), lambda n: (0, 0)),
            pl.BlockSpec((C_pi, 1), lambda n: (0, 0)),
            pl.BlockSpec((C_pi, 1), lambda n: (0, 0)),
            pl.BlockSpec((1, Lp), lambda n: (0, 0)),
            pl.BlockSpec((L, 1), lambda n: (0, 0)),
        ],
        out_specs=(
            pl.BlockSpec((1, M_pad, L), lambda n: (n, 0, 0)),
            pl.BlockSpec((1, M_pad, 1), lambda n: (n, 0, 0)),
            pl.BlockSpec((1, M_pad, 1), lambda n: (n, 0, 0)),
        ))
    return pl.pallas_call(
        kernel,
        out_shape=out_shape,
        grid_spec=grid_spec,
        compiler_params=pltpu.CompilerParams(
            dimension_semantics=("parallel",),
            vmem_limit_bytes=_VMEM_LIMIT),
    )(xp, lhs, scale_col, shift_col, pmask, smask)


def convt_final(xp, lhs, scale_col, shift_col, bias_col, H, W,
                *, out_dtype=jnp.bfloat16):
    N, C_pi, Lp = xp.shape
    M_pad = lhs.shape[0]
    R = W + 2
    L = H * R
    assert Lp == (H + 3) * R and lhs.shape[1] == 9 * C_pi
    pmask = _pad_valid_mask(H, W)
    kernel = functools.partial(_convt_final_kernel, R=R, L=L)
    grid_spec = pltpu.PrefetchScalarGridSpec(
        num_scalar_prefetch=0,
        grid=(N,),
        in_specs=[
            pl.BlockSpec((1, C_pi, Lp), lambda n: (n, 0, 0)),
            pl.BlockSpec((M_pad, 9 * C_pi), lambda n: (0, 0)),
            pl.BlockSpec((C_pi, 1), lambda n: (0, 0)),
            pl.BlockSpec((C_pi, 1), lambda n: (0, 0)),
            pl.BlockSpec((1, Lp), lambda n: (0, 0)),
            pl.BlockSpec((M_pad, 1), lambda n: (0, 0)),
        ],
        out_specs=pl.BlockSpec((1, M_pad, L), lambda n: (n, 0, 0)))
    return pl.pallas_call(
        kernel,
        out_shape=jax.ShapeDtypeStruct((N, M_pad, L), out_dtype),
        grid_spec=grid_spec,
        compiler_params=pltpu.CompilerParams(
            dimension_semantics=("parallel",),
            vmem_limit_bytes=_VMEM_LIMIT),
    )(xp, lhs, scale_col, shift_col, pmask, bias_col)


def l1_project(x2d, w2d):
    """Layer 1 (1x1 -> 4x4, stride 2, pad 0) == a single lane-dense GEMM
    (N, z) @ (z, C1*16)."""
    N, _ = x2d.shape
    _, M = w2d.shape
    Np = _ru8(N)
    a = jnp.pad(x2d.astype(jnp.bfloat16), ((0, Np - N), (0, 0)))
    y = pl.pallas_call(
        _matmul_kernel,
        out_shape=jax.ShapeDtypeStruct((Np, M), jnp.float32),
    )(a, w2d.astype(jnp.bfloat16))
    return y[:N]


# ---------------------------------------------------------------------------
# Full generator forward
# ---------------------------------------------------------------------------
def generator_wgan_forward(x_nchw, params):
    N = x_nchw.shape[0]

    # -------- layer 1: ConvT(z, C1, 4, 2, 0) == GEMM; BN stats in JAX -------
    w1, g1, b1 = params["block1"]
    z_dim, C1 = w1.shape[0], w1.shape[1]
    y1 = l1_project(x_nchw.reshape(N, z_dim), w1.reshape(z_dim, C1 * 16))
    y1c = y1.reshape(N, C1, 16)
    s1 = jnp.sum(y1c, axis=(0, 2))
    s2 = jnp.sum(y1c * y1c, axis=(0, 2))
    scale, shift = _bn_scale_shift(s1, s2, float(N * 16), g1, b1)

    H = W = 4
    C_pi = _ruC(C1)
    xp = jnp.pad(y1c.reshape(N, C1, 4, 4).astype(jnp.bfloat16),
                 ((0, 0), (0, C_pi - C1), (1, 2), (1, 1))
                 ).reshape(N, C_pi, (H + 3) * (W + 2))
    scale_col = _as_cols(scale, C_pi)
    shift_col = _as_cols(shift, C_pi)

    # ---- blocks 2..6: fused [BN affine + ReLU] -> ConvT -> partial BN stats ----
    for (w, gamma, beta) in params["blocks"]:
        C_out = w.shape[1]
        M = 4 * C_out
        M_pad = _ru8(M)
        lhs = build_stacked_lhs(w, C_pi, M_pad)
        y, ps1, ps2 = convt_block(xp, lhs, scale_col, shift_col, H, W)
        s1 = jnp.sum(ps1[:, :M, 0], axis=0).reshape(4, C_out).sum(axis=0)
        s2 = jnp.sum(ps2[:, :M, 0], axis=0).reshape(4, C_out).sum(axis=0)
        scale, shift = _bn_scale_shift(s1, s2, float(N * 4 * H * W), gamma, beta)
        C_pi = _ruC(C_out)
        xp = phase_to_next_input(y[:, :M, :], C_out, H, W, C_pi)
        scale_col = _as_cols(scale, C_pi)
        shift_col = _as_cols(shift, C_pi)
        H, W = 2 * H, 2 * W

    # -------- final: fused [BN affine + ReLU] -> ConvT -> bias + tanh -------
    wf, bf = params["final"]
    C_out = wf.shape[1]
    M = 4 * C_out
    M_pad = _ru8(M)
    lhs_f = build_stacked_lhs(wf, C_pi, M_pad)
    bias_col = jnp.pad(jnp.tile(bf.astype(jnp.float32), 4).reshape(M, 1),
                       ((0, M_pad - M), (0, 0)))
    y = convt_final(xp, lhs_f, scale_col, shift_col, bias_col, H, W)
    out = assemble_final(y[:, :M, :].astype(jnp.float32), C_out, H, W)
    return out


# ---------------------------------------------------------------------------
# Params / self-check / main
# ---------------------------------------------------------------------------
def init_params(key, z_dim, img_channels, features_g):
    chans = [z_dim, features_g * 32, features_g * 16, features_g * 8,
             features_g * 4, features_g * 2, features_g]
    key, wk = jax.random.split(key)
    w1 = jax.random.normal(wk, (chans[0], chans[1], 4, 4), jnp.float32) * 0.05
    block1 = (w1, jnp.ones((chans[1],), jnp.float32), jnp.zeros((chans[1],), jnp.float32))
    blocks = []
    for idx in range(1, 6):
        cin, cout = chans[idx], chans[idx + 1]
        key, wk = jax.random.split(key)
        w = jax.random.normal(wk, (cin, cout, 4, 4), jnp.float32) * 0.05
        blocks.append((w, jnp.ones((cout,), jnp.float32), jnp.zeros((cout,), jnp.float32)))
    key, wk, bk = jax.random.split(key, 3)
    wf = jax.random.normal(wk, (chans[6], img_channels, 4, 4), jnp.float32) * 0.05
    bf = jax.random.normal(bk, (img_channels,), jnp.float32) * 0.05
    return {"block1": block1, "blocks": blocks, "final": (wf, bf)}


def _self_check():
    """Check the stacked phase-decomposed kernel (with the fused BN-affine/ReLU
    prologue and MXU BN statistics) against an XLA dilated-conv reference."""
    key = jax.random.PRNGKey(42)
    k1, k2, k3, k4, k5 = jax.random.split(key, 5)
    Nb, C_in, C_out, H, W = 2, 8, 16, 6, 6
    xt = jax.random.normal(k1, (Nb, C_in, H, W), jnp.float32)
    wt = jax.random.normal(k2, (C_in, C_out, 4, 4), jnp.float32) * 0.1
    bt = jax.random.normal(k3, (C_out,), jnp.float32) * 0.1
    sc = jax.random.uniform(k4, (C_in,), jnp.float32, minval=0.5, maxval=1.5)
    sh = jax.random.normal(k5, (C_in,), jnp.float32) * 0.3

    # Reference: affine + ReLU then ConvTranspose2d(4,2,1), on bf16-rounded data.
    x_bf = xt.astype(jnp.bfloat16).astype(jnp.float32)
    w_bf = wt.astype(jnp.bfloat16).astype(jnp.float32)
    xr = jnp.maximum(x_bf * sc[None, :, None, None] + sh[None, :, None, None], 0.0)
    xr = xr.astype(jnp.bfloat16).astype(jnp.float32)
    ref = jax.lax.conv_general_dilated(
        xr, jnp.transpose(w_bf, (1, 0, 2, 3))[:, :, ::-1, ::-1],
        window_strides=(1, 1), padding=((2, 2), (2, 2)), lhs_dilation=(2, 2),
        dimension_numbers=("NCHW", "OIHW", "NCHW"))

    C_pi = _ruC(C_in)
    M = 4 * C_out
    M_pad = _ru8(M)
    xp = jnp.pad(xt.astype(jnp.bfloat16),
                 ((0, 0), (0, C_pi - C_in), (1, 2), (1, 1))
                 ).reshape(Nb, C_pi, (H + 3) * (W + 2))
    lhs = build_stacked_lhs(wt, C_pi, M_pad)
    scale_col = _as_cols(sc, C_pi)
    shift_col = _as_cols(sh, C_pi)

    y, s1, s2 = convt_block(xp, lhs, scale_col, shift_col, H, W)
    got = assemble_final(y[:, :M, :].astype(jnp.float32), C_out, H, W)
    denom = float(jnp.max(jnp.abs(ref))) + 1e-6
    err = float(jnp.max(jnp.abs(got - ref))) / denom
    assert err < 3e-2, f"convT mismatch (BN path), rel err {err}"

    # MXU-computed BN partial sums vs. direct sums of the stored output.
    s1c = jnp.sum(s1[:, :M, 0], axis=0).reshape(4, C_out).sum(axis=0)
    s2c = jnp.sum(s2[:, :M, 0], axis=0).reshape(4, C_out).sum(axis=0)
    exp_s1 = jnp.sum(got, axis=(0, 2, 3))
    exp_s2 = jnp.sum(got * got, axis=(0, 2, 3))
    tol1 = 1e-2 * float(jnp.sum(jnp.abs(got))) + 1e-3
    tol2 = 1e-2 * float(jnp.sum(got * got)) + 1e-3
    assert float(jnp.max(jnp.abs(s1c - exp_s1))) < tol1, "BN sum mismatch"
    assert float(jnp.max(jnp.abs(s2c - exp_s2))) < tol2, "BN sq-sum mismatch"

    # Final path: bias + tanh fused in the epilogue.
    bias_col = jnp.pad(jnp.tile(bt, 4).reshape(M, 1), ((0, M_pad - M), (0, 0)))
    yt = convt_final(xp, lhs, scale_col, shift_col, bias_col, H, W)
    got_t = assemble_final(yt[:, :M, :].astype(jnp.float32), C_out, H, W)
    ref_t = jnp.tanh(ref + bt.reshape(1, C_out, 1, 1))
    denom_t = float(jnp.max(jnp.abs(ref_t))) + 1e-6
    err_t = float(jnp.max(jnp.abs(got_t - ref_t))) / denom_t
    assert err_t < 3e-2, f"convT mismatch (tanh path), rel err {err_t}"


if __name__ == "__main__":
    # Small-but-consistent config: z_dim=16, features_g=4, img_channels=1.
    # The 7 transposed convs still map (N, z, 1, 1) -> (N, 1, 256, 256).
    z_dim, img_channels, features_g = 16, 1, 4
    batch = 2

    _self_check()

    key = jax.random.PRNGKey(0)
    key, xk = jax.random.split(key)
    x = jax.random.normal(xk, (batch, z_dim, 1, 1), jnp.float32)
    params = init_params(key, z_dim, img_channels, features_g)

    fwd = jax.jit(generator_wgan_forward)
    out = jax.block_until_ready(fwd(x, params))

    assert out.shape == (batch, img_channels, 256, 256), out.shape
    assert bool(jnp.all(jnp.isfinite(out)))
    assert bool(jnp.all(jnp.abs(out) <= 1.0 + 1e-6))  # tanh range
    print("KERNEL_OK")
</pallas_src>

<mosaic_0001>
module attributes {stable_mosaic.version = 11 : i64} {
  func.func @_convt_bn_kernel(%arg0: i32, %arg1: memref<1x16x72xbf16, #tpu.memory_space<vmem>>, %arg2: memref<64x144xbf16, #tpu.memory_space<vmem>>, %arg3: memref<16x1xf32, #tpu.memory_space<vmem>>, %arg4: memref<16x1xf32, #tpu.memory_space<vmem>>, %arg5: memref<1x72xf32, #tpu.memory_space<vmem>>, %arg6: memref<48x1xf32, #tpu.memory_space<vmem>>, %arg7: memref<1x64x48xbf16, #tpu.memory_space<vmem>>, %arg8: memref<1x64x1xf32, #tpu.memory_space<vmem>>, %arg9: memref<1x64x1xf32, #tpu.memory_space<vmem>>) attributes {dimension_semantics = [#tpu.dimension_semantics<parallel>], iteration_bounds = array<i64: 2>, scalar_prefetch = 0 : i64, scratch_operands = 0 : i64, tpu.core_type = #tpu.core_type<tc>, window_params = [{transform_indices = @transform_0, window_bounds = array<i64: 1, 16, 72>}, {pipeline_mode = #tpu.pipeline_mode<synchronous>, transform_indices = @transform_1, window_bounds = array<i64: 64, 144>}, {pipeline_mode = #tpu.pipeline_mode<synchronous>, transform_indices = @transform_2, window_bounds = array<i64: 16, 1>}, {pipeline_mode = #tpu.pipeline_mode<synchronous>, transform_indices = @transform_3, window_bounds = array<i64: 16, 1>}, {pipeline_mode = #tpu.pipeline_mode<synchronous>, transform_indices = @transform_4, window_bounds = array<i64: 1, 72>}, {pipeline_mode = #tpu.pipeline_mode<synchronous>, transform_indices = @transform_5, window_bounds = array<i64: 48, 1>}, {transform_indices = @transform_6, window_bounds = array<i64: 1, 64, 48>}, {transform_indices = @transform_7, window_bounds = array<i64: 1, 64, 1>}, {transform_indices = @transform_8, window_bounds = array<i64: 1, 64, 1>}]} {
    %c0 = arith.constant 0 : index
    %c0_0 = arith.constant 0 : index
    %c0_1 = arith.constant 0 : index
    %0 = vector.load %arg1[%c0, %c0_0, %c0_1] : memref<1x16x72xbf16, #tpu.memory_space<vmem>>, vector<1x16x72xbf16>
    %1 = vector.shape_cast %0 : vector<1x16x72xbf16> to vector<16x72xbf16>
    %2 = arith.extf %1 : vector<16x72xbf16> to vector<16x72xf32>
    %c0_2 = arith.constant 0 : index
    %c0_3 = arith.constant 0 : index
    %3 = vector.load %arg3[%c0_2, %c0_3] : memref<16x1xf32, #tpu.memory_space<vmem>>, vector<16x1xf32>
    %4 = vector.broadcast %3 : vector<16x1xf32> to vector<16x72xf32>
    %5 = arith.mulf %2, %4 : vector<16x72xf32>
    %c0_4 = arith.constant 0 : index
    %c0_5 = arith.constant 0 : index
    %6 = vector.load %arg4[%c0_4, %c0_5] : memref<16x1xf32, #tpu.memory_space<vmem>>, vector<16x1xf32>
    %7 = vector.broadcast %6 : vector<16x1xf32> to vector<16x72xf32>
    %8 = arith.addf %5, %7 : vector<16x72xf32>
    %cst = arith.constant 0.000000e+00 : f32
    %9 = vector.broadcast %cst : f32 to vector<16x72xf32>
    %10 = arith.maximumf %8, %9 : vector<16x72xf32>
    %c0_6 = arith.constant 0 : index
    %c0_7 = arith.constant 0 : index
    %11 = vector.load %arg5[%c0_6, %c0_7] : memref<1x72xf32, #tpu.memory_space<vmem>>, vector<1x72xf32>
    %12 = vector.broadcast %11 : vector<1x72xf32> to vector<16x72xf32>
    %13 = arith.mulf %10, %12 : vector<16x72xf32>
    %14 = arith.truncf %13 : vector<16x72xf32> to vector<16x72xbf16>
    %15 = vector.extract_strided_slice %14 {offsets = [0, 0], sizes = [16, 48], strides = [1, 1]} : vector<16x72xbf16> to vector<16x48xbf16>
    %16 = vector.extract_strided_slice %14 {offsets = [0, 1], sizes = [16, 48], strides = [1, 1]} : vector<16x72xbf16> to vector<16x48xbf16>
    %17 = vector.extract_strided_slice %14 {offsets = [0, 2], sizes = [16, 48], strides = [1, 1]} : vector<16x72xbf16> to vector<16x48xbf16>
    %18 = vector.extract_strided_slice %14 {offsets = [0, 8], sizes = [16, 48], strides = [1, 1]} : vector<16x72xbf16> to vector<16x48xbf16>
    %19 = vector.extract_strided_slice %14 {offsets = [0, 9], sizes = [16, 48], strides = [1, 1]} : vector<16x72xbf16> to vector<16x48xbf16>
    %20 = vector.extract_strided_slice %14 {offsets = [0, 10], sizes = [16, 48], strides = [1, 1]} : vector<16x72xbf16> to vector<16x48xbf16>
    %21 = vector.extract_strided_slice %14 {offsets = [0, 16], sizes = [16, 48], strides = [1, 1]} : vector<16x72xbf16> to vector<16x48xbf16>
    %22 = vector.extract_strided_slice %14 {offsets = [0, 17], sizes = [16, 48], strides = [1, 1]} : vector<16x72xbf16> to vector<16x48xbf16>
    %23 = vector.extract_strided_slice %14 {offsets = [0, 18], sizes = [16, 48], strides = [1, 1]} : vector<16x72xbf16> to vector<16x48xbf16>
    %24 = tpu.concatenate %15, %16, %17, %18, %19, %20, %21, %22, %23 in 0 : vector<16x48xbf16>, vector<16x48xbf16>, vector<16x48xbf16>, vector<16x48xbf16>, vector<16x48xbf16>, vector<16x48xbf16>, vector<16x48xbf16>, vector<16x48xbf16>, vector<16x48xbf16> -> vector<144x48xbf16>
    %c0_8 = arith.constant 0 : index
    %c0_9 = arith.constant 0 : index
    %25 = vector.load %arg2[%c0_8, %c0_9] : memref<64x144xbf16, #tpu.memory_space<vmem>>, vector<64x144xbf16>
    %cst_10 = arith.constant dense<0.000000e+00> : vector<64x48xf32>
    %26 = tpu.matmul %25, %24, %cst_10 {dimension_numbers = #tpu.dot_dimension_numbers<[1], [0], [0], [1], [0, 0, 1, 1], [], []>} : vector<64x144xbf16>, vector<144x48xbf16>, vector<64x48xf32> -> vector<64x48xf32>
    %27 = arith.truncf %26 : vector<64x48xf32> to vector<64x48xbf16>
    %c0_11 = arith.constant 0 : index
    %c0_12 = arith.constant 0 : index
    %c0_13 = arith.constant 0 : index
    %28 = vector.load %arg7[%c0_11, %c0_12, %c0_13] : memref<1x64x48xbf16, #tpu.memory_space<vmem>>, vector<1x64x48xbf16>
    %29 = vector.shape_cast %28 : vector<1x64x48xbf16> to vector<64x48xbf16>
    %30 = vector.shape_cast %27 : vector<64x48xbf16> to vector<1x64x48xbf16>
    tpu.vector_store %arg7[%c0_11, %c0_12, %c0_13], %30 {strides = array<i32>} : memref<1x64x48xbf16, #tpu.memory_space<vmem>>, vector<1x64x48xbf16>,
    %c0_14 = arith.constant 0 : index
    %c0_15 = arith.constant 0 : index
    %31 = vector.load %arg6[%c0_14, %c0_15] : memref<48x1xf32, #tpu.memory_space<vmem>>, vector<48x1xf32>
    %cst_16 = arith.constant dense<0.000000e+00> : vector<64x1xf32>
    %32 = tpu.matmul %26, %31, %cst_16 {dimension_numbers = #tpu.dot_dimension_numbers<[1], [0], [0], [1], [0, 0, 1, 1], [], []>} : vector<64x48xf32>, vector<48x1xf32>, vector<64x1xf32> -> vector<64x1xf32>
    %c0_17 = arith.constant 0 : index
    %c0_18 = arith.constant 0 : index
    %c0_19 = arith.constant 0 : index
    %33 = vector.load %arg8[%c0_17, %c0_18, %c0_19] : memref<1x64x1xf32, #tpu.memory_space<vmem>>, vector<1x64x1xf32>
    %34 = vector.shape_cast %33 : vector<1x64x1xf32> to vector<64x1xf32>
    %35 = vector.shape_cast %32 : vector<64x1xf32> to vector<1x64x1xf32>
    tpu.vector_store %arg8[%c0_17, %c0_18, %c0_19], %35 {strides = array<i32>} : memref<1x64x1xf32, #tpu.memory_space<vmem>>, vector<1x64x1xf32>,
    %36 = arith.mulf %26, %26 : vector<64x48xf32>
    %cst_20 = arith.constant dense<0.000000e+00> : vector<64x1xf32>
    %37 = tpu.matmul %36, %31, %cst_20 {dimension_numbers = #tpu.dot_dimension_numbers<[1], [0], [0], [1], [0, 0, 1, 1], [], []>} : vector<64x48xf32>, vector<48x1xf32>, vector<64x1xf32> -> vector<64x1xf32>
    %c0_21 = arith.constant 0 : index
    %c0_22 = arith.constant 0 : index
    %c0_23 = arith.constant 0 : index
    %38 = vector.load %arg9[%c0_21, %c0_22, %c0_23] : memref<1x64x1xf32, #tpu.memory_space<vmem>>, vector<1x64x1xf32>
    %39 = vector.shape_cast %38 : vector<1x64x1xf32> to vector<64x1xf32>
    %40 = vector.shape_cast %37 : vector<64x1xf32> to vector<1x64x1xf32>
    tpu.vector_store %arg9[%c0_21, %c0_22, %c0_23], %40 {strides = array<i32>} : memref<1x64x1xf32, #tpu.memory_space<vmem>>, vector<1x64x1xf32>,
    return
  }
  func.func @transform_0(%arg0: i32) -> (i32, i32, i32) {
    %c0_i32 = arith.constant 0 : i32
    %c0_i32_0 = arith.constant 0 : i32
    %c0_i32_1 = arith.constant 0 : i32
    return %arg0, %c0_i32, %c0_i32_0 : i32, i32, i32
  }
  func.func @transform_1(%arg0: i32) -> (i32, i32) {
    %c0_i32 = arith.constant 0 : i32
    %c0_i32_0 = arith.constant 0 : i32
    %c0_i32_1 = arith.constant 0 : i32
    return %c0_i32, %c0_i32_0 : i32, i32
  }
  func.func @transform_2(%arg0: i32) -> (i32, i32) {
    %c0_i32 = arith.constant 0 : i32
    %c0_i32_0 = arith.constant 0 : i32
    %c0_i32_1 = arith.constant 0 : i32
    return %c0_i32, %c0_i32_0 : i32, i32
  }
  func.func @transform_3(%arg0: i32) -> (i32, i32) {
    %c0_i32 = arith.constant 0 : i32
    %c0_i32_0 = arith.constant 0 : i32
    %c0_i32_1 = arith.constant 0 : i32
    return %c0_i32, %c0_i32_0 : i32, i32
  }
  func.func @transform_4(%arg0: i32) -> (i32, i32) {
    %c0_i32 = arith.constant 0 : i32
    %c0_i32_0 = arith.constant 0 : i32
    %c0_i32_1 = arith.constant 0 : i32
    return %c0_i32, %c0_i32_0 : i32, i32
  }
  func.func @transform_5(%arg0: i32) -> (i32, i32) {
    %c0_i32 = arith.constant 0 : i32
    %c0_i32_0 = arith.constant 0 : i32
    %c0_i32_1 = arith.constant 0 : i32
    return %c0_i32, %c0_i32_0 : i32, i32
  }
  func.func @transform_6(%arg0: i32) -> (i32, i32, i32) {
    %c0_i32 = arith.constant 0 : i32
    %c0_i32_0 = arith.constant 0 : i32
    %c0_i32_1 = arith.constant 0 : i32
    return %arg0, %c0_i32, %c0_i32_0 : i32, i32, i32
  }
  func.func @transform_7(%arg0: i32) -> (i32, i32, i32) {
    %c0_i32 = arith.constant 0 : i32
    %c0_i32_0 = arith.constant 0 : i32
    %c0_i32_1 = arith.constant 0 : i32
    return %arg0, %c0_i32, %c0_i32_0 : i32, i32, i32
  }
  func.func @transform_8(%arg0: i32) -> (i32, i32, i32) {
    %c0_i32 = arith.constant 0 : i32
    %c0_i32_0 = arith.constant 0 : i32
    %c0_i32_1 = arith.constant 0 : i32
    return %arg0, %c0_i32, %c0_i32_0 : i32, i32, i32
  }
}

</mosaic_0001>

<llo_original>
// kernel: tpu_custom_call.1
$region0: #{tpu_custom_call.1}
  #allocation0 [shape = 'u32[]', space=smem, size = 0x4, offset = 0x4, fixed_abs, tag = 'smem constant byte address 0x4 - core index']
  #allocation1 [shape = 'u32[144,128]{1,0:T(1,128)}', space=vmem, size = 0x12000, scoped, tag = 'internal scratch']
  %s0 = inlined_call_operand.vmem [shape: bf16[2,16,72], index: 0, kind: input, shape index: {}]
  %s1 = inlined_call_operand.vmem [shape: bf16[64,144], index: 1, kind: input, shape index: {}]
  %s2 = inlined_call_operand.vmem [shape: f32[16,1], index: 2, kind: input, shape index: {}]
  %s3 = inlined_call_operand.vmem [shape: f32[16,1], index: 3, kind: input, shape index: {}]
  %s4 = inlined_call_operand.vmem [shape: f32[1,72], index: 4, kind: input, shape index: {}]
  %s5 = inlined_call_operand.vmem [shape: f32[48,1], index: 5, kind: input, shape index: {}]
  %s6 = inlined_call_operand.vmem [shape: bf16[2,64,48], index: 6, kind: output, shape index: {0}]
  %s7 = inlined_call_operand.vmem [shape: f32[2,64,1], index: 7, kind: output, shape index: {1}]
  %s8 = inlined_call_operand.vmem [shape: f32[2,64,1], index: 8, kind: output, shape index: {2}]
  %9 = xla_tuple %s6, %s7, %s8
  %s10 = sld [smem:[#allocation0]]
  $region73: #{tpu_custom_call.1} parent=0
    _
  %s12 = ssub.s32 1, %s10
  %s13 = scalar_select 0, %s12, %s10
  loop: start=0, step=1, limit=4
  $region2: #{tpu_custom_call.1} parent=0 // loop_pre_header
    _
  $region3: #{tpu_custom_call.1} parent=0 // loop_header
    %s15 = sphi 0, %s19
    %p16 = scmp.ge.s32.totalorder %s15, 4
    %s25 = sphi 0, %s27
    %s28 = sphi 0, %s25
    %s29 = sphi 0, %s28
    %s45 = sphi 0, %s29
    %s49 = sphi 0, %s49
    %s51 = sphi 0, %s49
    %s52 = sphi 0, %s51
    %s66 = sphi 0, %s52
    %s70 = sphi 0, %s70
    %s72 = sphi 0, %s70
    %s73 = sphi 0, %s72
    %s87 = sphi 0, %s73
    %s91 = sphi 0, %s91
    %s93 = sphi 0, %s91
    %s94 = sphi 0, %s93
    %s108 = sphi 0, %s94
    %s112 = sphi 0, %s112
    %s114 = sphi 0, %s112
    %s115 = sphi 0, %s114
    %s129 = sphi 0, %s115
    %s133 = sphi 0, %s133
    %s135 = sphi 0, %s133
    %s136 = sphi 0, %s135
    %s150 = sphi 0, %s136
    %s156 = sphi 0, %s158
    %s159 = sphi 0, %s156
    %s160 = sphi 0, %s159
    %s176 = sphi 0, %s160
    %s182 = sphi 0, %s184
    %s185 = sphi 0, %s182
    %s186 = sphi 0, %s185
    %s202 = sphi 0, %s186
    %s208 = sphi 0, %s210
    %s211 = sphi 0, %s208
    %s212 = sphi 0, %s211
    %s228 = sphi 0, %s212
  $region4: #{tpu_custom_call.1} parent=0 // loop_header_branch
    %18 = sbr.rel (%p16) target = $region8
  $region5: #{tpu_custom_call.1} parent=0 // loop_body
    %s20 = ssub.s32 %s15, 1
    %s21 = ssub.s32 %s15, 2
    %s22 = sadd.s32 %s15, 1
    %s23 = ssub.s32 %s15, %s22
    %p24 = scmp.eq.s32.totalorder %s23, 0
    %s26 = sadd.s32 %s25, 1
    %s27 = scalar_select %p24, %s25, %s26
    %p30 = pneg %p24
    %p31 = scmp.eq.s32.totalorder %s15, 1
    %p32 = por %p30, %p31
    %p33 = scmp.ne.s32.totalorder %s25, %s28
    %p34 = scmp.eq.s32.totalorder %s15, 0
    %p35 = por %p33, %p34
    %p36 = scmp.ne.s32.totalorder %s25, %s28
    %p37 = scmp.eq.s32.totalorder %s20, 1
    %p38 = por %p36, %p37
    %p39 = scmp.ne.s32.totalorder %s28, %s29
    %p40 = scmp.eq.s32.totalorder %s20, 0
    %p41 = por %p39, %p40
    %p42 = scmp.ne.s32.totalorder %s28, %s29
    %p43 = scmp.eq.s32.totalorder %s21, 1
    %p44 = por %p42, %p43
    %p46 = scmp.ne.s32.totalorder %s29, %s45
    %p47 = scmp.eq.s32.totalorder %s21, 0
    %p48 = por %p46, %p47
    %s50 = sadd.s32 %s49, 1
    %p53 = scmp.eq.s32.totalorder %s15, 1
    %p54 = scmp.ne.s32.totalorder %s49, %s51
    %p55 = scmp.eq.s32.totalorder %s15, 0
    %p56 = por %p54, %p55
    %p57 = scmp.ne.s32.totalorder %s49, %s51
    %p58 = scmp.eq.s32.totalorder %s20, 1
    %p59 = por %p57, %p58
    %p60 = scmp.ne.s32.totalorder %s51, %s52
    %p61 = scmp.eq.s32.totalorder %s20, 0
    %p62 = por %p60, %p61
    %p63 = scmp.ne.s32.totalorder %s51, %s52
    %p64 = scmp.eq.s32.totalorder %s21, 1
    %p65 = por %p63, %p64
    %p67 = scmp.ne.s32.totalorder %s52, %s66
    %p68 = scmp.eq.s32.totalorder %s21, 0
    %p69 = por %p67, %p68
    %s71 = sadd.s32 %s70, 1
    %p74 = scmp.eq.s32.totalorder %s15, 1
    %p75 = scmp.ne.s32.totalorder %s70, %s72
    %p76 = scmp.eq.s32.totalorder %s15, 0
    %p77 = por %p75, %p76
    %p78 = scmp.ne.s32.totalorder %s70, %s72
    %p79 = scmp.eq.s32.totalorder %s20, 1
    %p80 = por %p78, %p79
    %p81 = scmp.ne.s32.totalorder %s72, %s73
    %p82 = scmp.eq.s32.totalorder %s20, 0
    %p83 = por %p81, %p82
    %p84 = scmp.ne.s32.totalorder %s72, %s73
    %p85 = scmp.eq.s32.totalorder %s21, 1
    %p86 = por %p84, %p85
    %p88 = scmp.ne.s32.totalorder %s73, %s87
    %p89 = scmp.eq.s32.totalorder %s21, 0
    %p90 = por %p88, %p89
    %s92 = sadd.s32 %s91, 1
    %p95 = scmp.eq.s32.totalorder %s15, 1
    %p96 = scmp.ne.s32.totalorder %s91, %s93
    %p97 = scmp.eq.s32.totalorder %s15, 0
    %p98 = por %p96, %p97
    %p99 = scmp.ne.s32.totalorder %s91, %s93
    %p100 = scmp.eq.s32.totalorder %s20, 1
    %p101 = por %p99, %p100
    %p102 = scmp.ne.s32.totalorder %s93, %s94
    %p103 = scmp.eq.s32.totalorder %s20, 0
    %p104 = por %p102, %p103
    %p105 = scmp.ne.s32.totalorder %s93, %s94
    %p106 = scmp.eq.s32.totalorder %s21, 1
    %p107 = por %p105, %p106
    %p109 = scmp.ne.s32.totalorder %s94, %s108
    %p110 = scmp.eq.s32.totalorder %s21, 0
    %p111 = por %p109, %p110
    %s113 = sadd.s32 %s112, 1
    %p116 = scmp.eq.s32.totalorder %s15, 1
    %p117 = scmp.ne.s32.totalorder %s112, %s114
    %p118 = scmp.eq.s32.totalorder %s15, 0
    %p119 = por %p117, %p118
    %p120 = scmp.ne.s32.totalorder %s112, %s114
    %p121 = scmp.eq.s32.totalorder %s20, 1
    %p122 = por %p120, %p121
    %p123 = scmp.ne.s32.totalorder %s114, %s115
    %p124 = scmp.eq.s32.totalorder %s20, 0
    %p125 = por %p123, %p124
    %p126 = scmp.ne.s32.totalorder %s114, %s115
    %p127 = scmp.eq.s32.totalorder %s21, 1
    %p128 = por %p126, %p127
    %p130 = scmp.ne.s32.totalorder %s115, %s129
    %p131 = scmp.eq.s32.totalorder %s21, 0
    %p132 = por %p130, %p131
    %s134 = sadd.s32 %s133, 1
    %p137 = scmp.eq.s32.totalorder %s15, 1
    %p138 = scmp.ne.s32.totalorder %s133, %s135
    %p139 = scmp.eq.s32.totalorder %s15, 0
    %p140 = por %p138, %p139
    %p141 = scmp.ne.s32.totalorder %s133, %s135
    %p142 = scmp.eq.s32.totalorder %s20, 1
    %p143 = por %p141, %p142
    %p144 = scmp.ne.s32.totalorder %s135, %s136
    %p145 = scmp.eq.s32.totalorder %s20, 0
    %p146 = por %p144, %p145
    %p147 = scmp.ne.s32.totalorder %s135, %s136
    %p148 = scmp.eq.s32.totalorder %s21, 1
    %p149 = por %p147, %p148
    %p151 = scmp.ne.s32.totalorder %s136, %s150
    %p152 = scmp.eq.s32.totalorder %s21, 0
    %p153 = por %p151, %p152
    %s154 = ssub.s32 %s15, %s22
    %p155 = scmp.eq.s32.totalorder %s154, 0
    %s157 = sadd.s32 %s156, 1
    %s158 = scalar_select %p155, %s156, %s157
    %p161 = pneg %p155
    %p162 = scmp.eq.s32.totalorder %s15, 1
    %p163 = por %p161, %p162
    %p164 = scmp.ne.s32.totalorder %s156, %s159
    %p165 = scmp.eq.s32.totalorder %s15, 0
    %p166 = por %p164, %p165
    %p167 = scmp.ne.s32.totalorder %s156, %s159
    %p168 = scmp.eq.s32.totalorder %s20, 1
    %p169 = por %p167, %p168
    %p170 = scmp.ne.s32.totalorder %s159, %s160
    %p171 = scmp.eq.s32.totalorder %s20, 0
    %p172 = por %p170, %p171
    %p173 = scmp.ne.s32.totalorder %s159, %s160
    %p174 = scmp.eq.s32.totalorder %s21, 1
    %p175 = por %p173, %p174
    %p177 = scmp.ne.s32.totalorder %s160, %s176
    %p178 = scmp.eq.s32.totalorder %s21, 0
    %p179 = por %p177, %p178
    %s180 = ssub.s32 %s15, %s22
    %p181 = scmp.eq.s32.totalorder %s180, 0
    %s183 = sadd.s32 %s182, 1
    %s184 = scalar_select %p181, %s182, %s183
    %p187 = pneg %p181
    %p188 = scmp.eq.s32.totalorder %s15, 1
    %p189 = por %p187, %p188
    %p190 = scmp.ne.s32.totalorder %s182, %s185
    %p191 = scmp.eq.s32.totalorder %s15, 0
    %p192 = por %p190, %p191
    %p193 = scmp.ne.s32.totalorder %s182, %s185
    %p194 = scmp.eq.s32.totalorder %s20, 1
    %p195 = por %p193, %p194
    %p196 = scmp.ne.s32.totalorder %s185, %s186
    %p197 = scmp.eq.s32.totalorder %s20, 0
    %p198 = por %p196, %p197
    %p199 = scmp.ne.s32.totalorder %s185, %s186
    %p200 = scmp.eq.s32.totalorder %s21, 1
    %p201 = por %p199, %p200
    %p203 = scmp.ne.s32.totalorder %s186, %s202
    %p204 = scmp.eq.s32.totalorder %s21, 0
    %p205 = por %p203, %p204
    %s206 = ssub.s32 %s15, %s22
    %p207 = scmp.eq.s32.totalorder %s206, 0
    %s209 = sadd.s32 %s208, 1
    %s210 = scalar_select %p207, %s208, %s209
    %p213 = pneg %p207
    %p214 = scmp.eq.s32.totalorder %s15, 1
    %p215 = por %p213, %p214
    %p216 = scmp.ne.s32.totalorder %s208, %s211
    %p217 = scmp.eq.s32.totalorder %s15, 0
    %p218 = por %p216, %p217
    %p219 = scmp.ne.s32.totalorder %s208, %s211
    %p220 = scmp.eq.s32.totalorder %s20, 1
    %p221 = por %p219, %p220
    %p222 = scmp.ne.s32.totalorder %s211, %s212
    %p223 = scmp.eq.s32.totalorder %s20, 0
    %p224 = por %p222, %p223
    %p225 = scmp.ne.s32.totalorder %s211, %s212
    %p226 = scmp.eq.s32.totalorder %s21, 1
    %p227 = por %p225, %p226
    %p229 = scmp.ne.s32.totalorder %s212, %s228
    %p230 = scmp.eq.s32.totalorder %s21, 0
    %p231 = por %p229, %p230
    %p232 = scmp.le.s32.totalorder 1, %s15
    %p233 = scmp.lt.s32.totalorder %s15, 3
    %p234 = pnand %p232, %p233
    %p235 = pneg %p234
    // Predicated region
    $region9: #{tpu_custom_call.1} parent=5 // pred_check
      _
    $region10: #{tpu_custom_call.1} parent=5 // pred_check_branch
      %237 = sbr.rel (%p234) target = $region12
    $region11: #{tpu_custom_call.1} parent=5 // pred_region
      %s238 = ssub.s32 %s15, 1
      // Predicated region
      $region13: #{tpu_custom_call.1} parent=11 // pred_check
        %p239 = pneg %p62
      $region14: #{tpu_custom_call.1} parent=11 // pred_check_branch
        %241 = sbr.rel (%p239) target = $region16
      $region15: #{tpu_custom_call.1} parent=11 // pred_region
        _
      $region16: #{tpu_custom_call.1} parent=11 // pred_fallthru
        _
      // Predicated region
      $region17: #{tpu_custom_call.1} parent=11 // pred_check
        %p242 = pneg %p83
      $region18: #{tpu_custom_call.1} parent=11 // pred_check_branch
        %244 = sbr.rel (%p242) target = $region20
      $region19: #{tpu_custom_call.1} parent=11 // pred_region
        _
      $region20: #{tpu_custom_call.1} parent=11 // pred_fallthru
        _
      // Predicated region
      $region21: #{tpu_custom_call.1} parent=11 // pred_check
        %p245 = pneg %p104
      $region22: #{tpu_custom_call.1} parent=11 // pred_check_branch
        %247 = sbr.rel (%p245) target = $region24
      $region23: #{tpu_custom_call.1} parent=11 // pred_region
        _
      $region24: #{tpu_custom_call.1} parent=11 // pred_fallthru
        _
      // Predicated region
      $region25: #{tpu_custom_call.1} parent=11 // pred_check
        %p248 = pneg %p125
      $region26: #{tpu_custom_call.1} parent=11 // pred_check_branch
        %250 = sbr.rel (%p248) target = $region28
      $region27: #{tpu_custom_call.1} parent=11 // pred_region
        _
      $region28: #{tpu_custom_call.1} parent=11 // pred_fallthru
        _
      // Predicated region
      $region29: #{tpu_custom_call.1} parent=11 // pred_check
        %p251 = pneg %p146
      $region30: #{tpu_custom_call.1} parent=11 // pred_check_branch
        %253 = sbr.rel (%p251) target = $region32
      $region31: #{tpu_custom_call.1} parent=11 // pred_region
        _
      $region32: #{tpu_custom_call.1} parent=11 // pred_fallthru
        _
    $region12: #{tpu_custom_call.1} parent=5 // pred_fallthru
      _
    %p254 = scmp.lt.s32.totalorder %s15, 2
    // Predicated region
    $region33: #{tpu_custom_call.1} parent=5 // pred_check
      %p255 = pneg %p254
    $region34: #{tpu_custom_call.1} parent=5 // pred_check_branch
      %257 = sbr.rel (%p255) target = $region36
    $region35: #{tpu_custom_call.1} parent=5 // pred_region
      // Predicated region
      $region37: #{tpu_custom_call.1} parent=35 // pred_check
        %p258 = pneg %p35
      $region38: #{tpu_custom_call.1} parent=35 // pred_check_branch
        %260 = sbr.rel (%p258) target = $region40
      $region39: #{tpu_custom_call.1} parent=35 // pred_region
        %p261 = scmp.lt.s32.totalorder %s15, 1
        %s262 = scalar_select %p261, %s15, 1
        %s263 = smul.addr %s262, 2
        %s264 = smul.addr %s263, 4
        %s265 = scalar_lea.vmem %s0, %s264
      $region40: #{tpu_custom_call.1} parent=35 // pred_fallthru
        _
    $region36: #{tpu_custom_call.1} parent=5 // pred_fallthru
      _
    %p266 = scmp.le.s32.totalorder 1, %s15
    %p267 = scmp.lt.s32.totalorder %s15, 3
    %p268 = pnand %p266, %p267
    %p269 = pneg %p268
    // Predicated region
    $region41: #{tpu_custom_call.1} parent=5 // pred_check
      _
    $region42: #{tpu_custom_call.1} parent=5 // pred_check_branch
      %271 = sbr.rel (%p268) target = $region44
    $region43: #{tpu_custom_call.1} parent=5 // pred_region
      %s272 = ssub.s32 %s15, 1
      %p273 = scmp.lt.s32.totalorder %s20, 1
      %s274 = scalar_select %p273, %s20, 1
      %s275 = smul.addr %s274, 2
      %s276 = smul.addr %s275, 4
      %s277 = scalar_lea.vmem %s0, %s276
      %p278 = pneg %p41
      %p279 = pneg %p38
      %p280 = pneg %p62
      %p281 = pneg %p59
      %p282 = pneg %p83
      %p283 = pneg %p80
      %p284 = pneg %p104
      %p285 = pneg %p101
      %p286 = pneg %p125
      %p287 = pneg %p122
      %p288 = pneg %p146
      %p289 = pneg %p143
      %p290 = pneg %p172
      %p291 = pneg %p169
      %p292 = scmp.lt.s32.totalorder %s20, 1
      %s293 = scalar_select %p292, %s20, 1
      %s294 = smul.addr %s293, 8
      %s295 = smul.addr %s294, 4
      %s296 = scalar_lea.vmem %s6, %s295
      %p297 = pneg %p198
      %p298 = pneg %p195
      %p299 = scmp.lt.s32.totalorder %s20, 1
      %s300 = scalar_select %p299, %s20, 1
      %s301 = smul.addr %s300, 8
      %s302 = smul.addr %s301, 8
      %s303 = scalar_lea.vmem %s7, %s302
      %p304 = pneg %p224
      %p305 = pneg %p221
      %p306 = scmp.lt.s32.totalorder %s20, 1
      %s307 = scalar_select %p306, %s20, 1
      %s308 = smul.addr %s307, 8
      %s309 = smul.addr %s308, 8
      %s310 = scalar_lea.vmem %s8, %s309
      %p311 = scmp.lt.s32.totalorder %s20, 1
      %s312 = scalar_select %p311, %s20, 1
      %s313 = smul.addr %s312, 2
      %s314 = smul.addr %s313, 4
      %s315 = scalar_lea.vmem %s0, %s314
      %p316 = scmp.lt.s32.totalorder %s20, 1
      %s317 = scalar_select %p316, %s20, 1
      %s318 = smul.addr %s317, 8
      %s319 = smul.addr %s318, 4
      %s320 = scalar_lea.vmem %s6, %s319
      %p321 = scmp.lt.s32.totalorder %s20, 1
      %s322 = scalar_select %p321, %s20, 1
      %s323 = smul.addr %s322, 8
      %s324 = smul.addr %s323, 8
      %s325 = scalar_lea.vmem %s7, %s324
      %p326 = scmp.lt.s32.totalorder %s20, 1
      %s327 = scalar_select %p326, %s20, 1
      %s328 = smul.addr %s327, 8
      %s329 = smul.addr %s328, 8
      %s330 = scalar_lea.vmem %s8, %s329
      %v332 = vld [vmem:[%s315] sm:$0xf]
      %v333 = vld [vmem:[%s315 + $0x4] sm:$0xf]
      %v334 = vunpack.c.l.bf16 %v332
      %v335 = vunpack.c.l.bf16 %v333
      %v336 = vld [vmem:[%s2] sm:$0xff]
      %v337 = vld [vmem:[%s2 + $0x8] sm:$0xff]
      %339 = vset.pattern.permute.xlu0 0
      %340 = vperm.xlu0 %339, %v336
      %v341 = vpop.permute.xlu0 %340
      %344 = vset.pattern.permute.xlu0 0
      %345 = vperm.xlu0 %344, %v337
      %v346 = vpop.permute.xlu0 %345
      %v348 = vmul.f32 %v334, %v341
      %v349 = vmul.f32 %v335, %v346
      %v350 = vld [vmem:[%s3] sm:$0xff]
      %v351 = vld [vmem:[%s3 + $0x8] sm:$0xff]
      %353 = vset.pattern.permute.xlu0 0
      %354 = vperm.xlu0 %353, %v350
      %v355 = vpop.permute.xlu0 %354
      %358 = vset.pattern.permute.xlu0 0
      %359 = vperm.xlu0 %358, %v351
      %v360 = vpop.permute.xlu0 %359
      %v362 = vadd.f32 %v348, %v355
      %v363 = vadd.f32 %v349, %v360
      %v364 = vmax.f32 %v362, 0.0
      %v365 = vmax.f32 %v363, 0.0
      %v366 = vld [vmem:[%s4] sm:$0x1]
      %v368 = vlaneseq
      %v369 = vshrl.u32 %v368, 7
      %v370 = vsub.s32 0, %v369
      %v371 = vrot.slane %v366, %v370
      %v373 = vmul.f32 %v364, %v371
      %v374 = vmul.f32 %v365, %v371
      %v375 = vpack.c.bf16 %v374, %v373
      %377 = vrot.lane.b32.xlu0 %v375, 127
      %v378 = vpop.permute.xlu0 %377
      %380 = vrot.lane.b32.xlu0 %v375, 126
      %v381 = vpop.permute.xlu0 %380
      %383 = vrot.lane.b32.xlu0 %v375, 120
      %v384 = vpop.permute.xlu0 %383
      %386 = vrot.lane.b32.xlu0 %v375, 119
      %v387 = vpop.permute.xlu0 %386
      %389 = vrot.lane.b32.xlu0 %v375, 118
      %v390 = vpop.permute.xlu0 %389
      %392 = vrot.lane.b32.xlu0 %v375, 112
      %v393 = vpop.permute.xlu0 %392
      %395 = vrot.lane.b32.xlu0 %v375, 111
      %v396 = vpop.permute.xlu0 %395
      %398 = vrot.lane.b32.xlu0 %v375, 110
      %v399 = vpop.permute.xlu0 %398
      %v401 = vld [vmem:[%s1] sm:$0xff]
      %v402 = vld [vmem:[%s1 + $0x8] sm:$0xff]
      %v403 = vld [vmem:[%s1 + $0x10] sm:$0xff]
      %v404 = vld [vmem:[%s1 + $0x18] sm:$0xff]
      %v405 = vld [vmem:[%s1 + $0x20] sm:$0xff]
      %v406 = vld [vmem:[%s1 + $0x28] sm:$0xff]
      %v407 = vld [vmem:[%s1 + $0x30] sm:$0xff]
      %v408 = vld [vmem:[%s1 + $0x38] sm:$0xff]
      %v417 = vunpack.c.l.b16 %v401
      %v418 = vunpack.c.h.b16 %v401
      %v419 = vunpack.c.l.b16 %v402
      %v420 = vunpack.c.h.b16 %v402
      %v421 = vunpack.c.l.b16 %v403
      %v422 = vunpack.c.h.b16 %v403
      %v423 = vunpack.c.l.b16 %v404
      %v424 = vunpack.c.h.b16 %v404
      %v425 = vunpack.c.l.b16 %v405
      %v426 = vunpack.c.h.b16 %v405
      %v427 = vunpack.c.l.b16 %v406
      %v428 = vunpack.c.h.b16 %v406
      %v429 = vunpack.c.l.b16 %v407
      %v430 = vunpack.c.h.b16 %v407
      %v431 = vunpack.c.l.b16 %v408
      %v432 = vunpack.c.h.b16 %v408
      %v433 = vpack.c.b16 %v419, %v417
      %v434 = vpack.c.b16 %v420, %v418
      %v435 = vpack.c.b16 %v423, %v421
      %v436 = vpack.c.b16 %v424, %v422
      %v437 = vpack.c.b16 %v427, %v425
      %v438 = vpack.c.b16 %v428, %v426
      %v439 = vpack.c.b16 %v431, %v429
      %v440 = vpack.c.b16 %v432, %v430
      %vm445 = vcmask 130048
      %v447 = vsel %vm445, %v434, 0
      %v450 = vsel %vm445, %v436, 0
      %v453 = vsel %vm445, %v438, 0
      %v456 = vsel %vm445, %v440, 0
      %458 = vmatprep.subr.bf16.mxu0 0
      %459 = vmatpush1.bf16.msra.mxu0 %v375
      %460 = vmatprep.subr.bf16.mxu0 0
      %461 = vmatpush1.bf16.msra.mxu0 %v378
      %462 = vmatprep.subr.bf16.mxu0 0
      %463 = vmatpush1.bf16.msra.mxu0 %v381
      %464 = vmatprep.subr.bf16.mxu0 0
      %465 = vmatpush1.bf16.msra.mxu0 %v384
      %466 = vmatprep.subr.bf16.mxu0 0
      %467 = vmatpush1.bf16.msra.mxu0 %v387
      %468 = vmatprep.subr.bf16.mxu0 0
      %469 = vmatpush1.bf16.msra.mxu0 %v390
      %470 = vmatprep.subr.bf16.mxu0 0
      %471 = vmatpush1.bf16.msra.mxu0 %v393
      %472 = vmatprep.subr.bf16.mxu0 0
      %473 = vmatpush1.bf16.msra.mxu0 %v396
      %474 = vmatprep.subr.bf16.mxu0 0
      %475 = vmatpush1.bf16.msra.mxu0 %v399
      %476 = vmatprep.subr.bf16.mxu0 0
      %477 = vmatpush1.bf16.msra.mxu0 0
      %478 = vmatprep.subr.bf16.mxu0 0
      %479 = vmatpush1.bf16.msra.mxu0 0
      %480 = vmatprep.subr.bf16.mxu0 0
      %481 = vmatpush1.bf16.msra.mxu0 0
      %482 = vmatprep.subr.bf16.mxu0 0
      %483 = vmatpush1.bf16.msra.mxu0 0
      %484 = vmatprep.subr.bf16.mxu0 0
      %485 = vmatpush1.bf16.msra.mxu0 0
      %486 = vmatprep.subr.bf16.mxu0 0
      %487 = vmatpush1.bf16.msra.mxu0 0
      %488 = vmatprep.subr.bf16.mxu0 0
      %489 = vmatpush1.bf16.msra.mxu0 0
      %490 = vmatprep.mubr.bf16.mxu0 %v447
      %491 = vmatmul.mubr.bf16.gmra.mrb[0].mxu0 %v433
      %v492 = vpop.f32.mrb[0].mxu0
      %v493 = vadd.f32 0.0, %v492
      %v494 = vpop.f32.mrb[0].mxu0
      %v495 = vpop.f32.mrb[0].mxu0
      %v496 = vadd.f32 0.0, %v495
      %v497 = vpop.f32.mrb[0].mxu0
      %498 = vmatprep.mubr.bf16.mxu0 %v450
      %499 = vmatmul.mubr.bf16.gmra.mrb[0].mxu0 %v435
      %v500 = vpop.f32.mrb[0].mxu0
      %v501 = vadd.f32 0.0, %v500
      %v502 = vpop.f32.mrb[0].mxu0
      %v503 = vpop.f32.mrb[0].mxu0
      %v504 = vadd.f32 0.0, %v503
      %v505 = vpop.f32.mrb[0].mxu0
      %506 = vmatprep.mubr.bf16.mxu0 %v453
      %507 = vmatmul.mubr.bf16.gmra.mrb[0].mxu0 %v437
      %v508 = vpop.f32.mrb[0].mxu0
      %v509 = vadd.f32 0.0, %v508
      %v510 = vpop.f32.mrb[0].mxu0
      %v511 = vpop.f32.mrb[0].mxu0
      %v512 = vadd.f32 0.0, %v511
      %v513 = vpop.f32.mrb[0].mxu0
      %514 = vmatprep.mubr.bf16.mxu0 %v456
      %515 = vmatmul.mubr.bf16.gmra.mrb[0].mxu0 %v439
      %v516 = vpop.f32.mrb[0].mxu0
      %v517 = vadd.f32 0.0, %v516
      %v518 = vpop.f32.mrb[0].mxu0
      %v519 = vpop.f32.mrb[0].mxu0
      %v520 = vadd.f32 0.0, %v519
      %v521 = vpop.f32.mrb[0].mxu0
      %522 = vdwg.mxu0
      %v523 = vpack.c.bf16 %v496, %v493
      %v524 = vpack.c.bf16 %v504, %v501
      %v525 = vpack.c.bf16 %v512, %v509
      %v526 = vpack.c.bf16 %v520, %v517
      %v531 = vunpack.c.l.b16 %v523
      %v532 = vunpack.c.h.b16 %v523
      %v533 = vunpack.c.l.b16 %v524
      %v534 = vunpack.c.h.b16 %v524
      %v535 = vunpack.c.l.b16 %v525
      %v536 = vunpack.c.h.b16 %v525
      %v537 = vunpack.c.l.b16 %v526
      %v538 = vunpack.c.h.b16 %v526
      %v539 = vpack.c.b16 %v531, %v531
      %v540 = vpack.c.b16 %v532, %v532
      %v541 = vpack.c.b16 %v533, %v533
      %v542 = vpack.c.b16 %v534, %v534
      %v543 = vpack.c.b16 %v535, %v535
      %v544 = vpack.c.b16 %v536, %v536
      %v545 = vpack.c.b16 %v537, %v537
      %v546 = vpack.c.b16 %v538, %v538
      %vm555 = vcmask 388096
      %556 = vst.msk [vmem:[%s320] sm:$0xf] %vm555, %v539
      %557 = vst.msk [vmem:[%s320 + $0x4] sm:$0xf] %vm555, %v540
      %558 = vst.msk [vmem:[%s320 + $0x8] sm:$0xf] %vm555, %v541
      %559 = vst.msk [vmem:[%s320 + $0xc] sm:$0xf] %vm555, %v542
      %560 = vst.msk [vmem:[%s320 + $0x10] sm:$0xf] %vm555, %v543
      %561 = vst.msk [vmem:[%s320 + $0x14] sm:$0xf] %vm555, %v544
      %562 = vst.msk [vmem:[%s320 + $0x18] sm:$0xf] %vm555, %v545
      %563 = vst.msk [vmem:[%s320 + $0x1c] sm:$0xf] %vm555, %v546
      %v564 = vld [vmem:[%s5] sm:$0xff]
      %v565 = vld [vmem:[%s5 + $0x8] sm:$0xff]
      %v566 = vld [vmem:[%s5 + $0x10] sm:$0xff]
      %v567 = vld [vmem:[%s5 + $0x18] sm:$0xff]
      %v568 = vld [vmem:[%s5 + $0x20] sm:$0xff]
      %v569 = vld [vmem:[%s5 + $0x28] sm:$0xff]
      %vm570 = vcmask 392192
      %v572 = vsel %vm570, %v493, 0
      %v575 = vsel %vm570, %v496, 0
      %v578 = vsel %vm570, %v501, 0
      %v581 = vsel %vm570, %v504, 0
      %v584 = vsel %vm570, %v509, 0
      %v587 = vsel %vm570, %v512, 0
      %v590 = vsel %vm570, %v517, 0
      %v593 = vsel %vm570, %v520, 0
      %595 = vmatprep.subr.mxu0 0.0
      %596 = vmatpush1.msra.mxu0 %v564
      %597 = vmatprep.subr.mxu0 0.0
      %598 = vmatpush1.msra.mxu0 %v565
      %599 = vmatprep.subr.mxu0 0.0
      %600 = vmatpush1.msra.mxu0 %v566
      %601 = vmatprep.subr.mxu0 0.0
      %602 = vmatpush1.msra.mxu0 %v567
      %603 = vmatprep.subr.mxu0 0.0
      %604 = vmatpush1.msra.mxu0 %v568
      %605 = vmatprep.subr.mxu0 0.0
      %606 = vmatpush1.msra.mxu0 %v569
      %607 = vmatprep.subr.mxu0 0.0
      %608 = vmatpush1.msra.mxu0 0.0
      %609 = vmatprep.subr.mxu0 0.0
      %610 = vmatpush1.msra.mxu0 0.0
      %611 = vmatprep.subr.mxu0 0.0
      %612 = vmatpush1.msra.mxu0 0.0
      %613 = vmatprep.subr.mxu0 0.0
      %614 = vmatpush1.msra.mxu0 0.0
      %615 = vmatprep.subr.mxu0 0.0
      %616 = vmatpush1.msra.mxu0 0.0
      %617 = vmatprep.subr.mxu0 0.0
      %618 = vmatpush1.msra.mxu0 0.0
      %619 = vmatprep.subr.mxu0 0.0
      %620 = vmatpush1.msra.mxu0 0.0
      %621 = vmatprep.subr.mxu0 0.0
      %622 = vmatpush1.msra.mxu0 0.0
      %623 = vmatprep.subr.mxu0 0.0
      %624 = vmatpush1.msra.mxu0 0.0
      %625 = vmatprep.subr.mxu0 0.0
      %626 = vmatpush1.msra.mxu0 0.0
      %627 = vmatprep.subr.mxu0 0.0
      %628 = vmatpush1.msra.mxu0 0.0
      %629 = vmatprep.subr.mxu0 0.0
      %630 = vmatpush1.msra.mxu0 0.0
      %631 = vmatprep.subr.mxu0 0.0
      %632 = vmatpush1.msra.mxu0 0.0
      %633 = vmatprep.subr.mxu0 0.0
      %634 = vmatpush1.msra.mxu0 0.0
      %635 = vmatprep.subr.mxu0 0.0
      %636 = vmatpush1.msra.mxu0 0.0
      %637 = vmatprep.subr.mxu0 0.0
      %638 = vmatpush1.msra.mxu0 0.0
      %639 = vmatprep.subr.mxu0 0.0
      %640 = vmatpush1.msra.mxu0 0.0
      %641 = vmatprep.subr.mxu0 0.0
      %642 = vmatpush1.msra.mxu0 0.0
      %643 = vmatprep.subr.mxu0 0.0
      %644 = vmatpush1.msra.mxu0 0.0
      %645 = vmatprep.subr.mxu0 0.0
      %646 = vmatpush1.msra.mxu0 0.0
      %647 = vmatprep.subr.mxu0 0.0
      %648 = vmatpush1.msra.mxu0 0.0
      %649 = vmatprep.subr.mxu0 0.0
      %650 = vmatpush1.msra.mxu0 0.0
      %651 = vmatprep.subr.mxu0 0.0
      %652 = vmatpush1.msra.mxu0 0.0
      %653 = vmatprep.subr.mxu0 0.0
      %654 = vmatpush1.msra.mxu0 0.0
      %655 = vmatprep.subr.mxu0 0.0
      %656 = vmatpush1.msra.mxu0 0.0
      %657 = vmatprep.subr.mxu0 0.0
      %658 = vmatpush1.msra.mxu0 0.0
      %659 = vmatprep.mubr.f32.mxu0 0.0
      %660 = vmatmul.mubr.f32.gmra.mrb[0].mxu0 %v572
      %v661 = vpop.f32.mrb[0].mxu0
      %v662 = vadd.f32 0.0, %v661
      %v663 = vpop.f32.mrb[0].mxu0
      %664 = vmatprep.mubr.f32.mxu0 0.0
      %665 = vmatmul.mubr.f32.gmra.mrb[0].mxu0 %v575
      %v666 = vpop.f32.mrb[0].mxu0
      %v667 = vadd.f32 0.0, %v666
      %v668 = vpop.f32.mrb[0].mxu0
      %669 = vmatprep.mubr.f32.mxu0 0.0
      %670 = vmatmul.mubr.f32.gmra.mrb[0].mxu0 %v578
      %v671 = vpop.f32.mrb[0].mxu0
      %v672 = vadd.f32 0.0, %v671
      %v673 = vpop.f32.mrb[0].mxu0
      %674 = vmatprep.mubr.f32.mxu0 0.0
      %675 = vmatmul.mubr.f32.gmra.mrb[0].mxu0 %v581
      %v676 = vpop.f32.mrb[0].mxu0
      %v677 = vadd.f32 0.0, %v676
      %v678 = vpop.f32.mrb[0].mxu0
      %679 = vmatprep.mubr.f32.mxu0 0.0
      %680 = vmatmul.mubr.f32.gmra.mrb[0].mxu0 %v584
      %v681 = vpop.f32.mrb[0].mxu0
      %v682 = vadd.f32 0.0, %v681
      %v683 = vpop.f32.mrb[0].mxu0
      %684 = vmatprep.mubr.f32.mxu0 0.0
      %685 = vmatmul.mubr.f32.gmra.mrb[0].mxu0 %v587
      %v686 = vpop.f32.mrb[0].mxu0
      %v687 = vadd.f32 0.0, %v686
      %v688 = vpop.f32.mrb[0].mxu0
      %689 = vmatprep.mubr.f32.mxu0 0.0
      %690 = vmatmul.mubr.f32.gmra.mrb[0].mxu0 %v590
      %v691 = vpop.f32.mrb[0].mxu0
      %v692 = vadd.f32 0.0, %v691
      %v693 = vpop.f32.mrb[0].mxu0
      %694 = vmatprep.mubr.f32.mxu0 0.0
      %695 = vmatmul.mubr.f32.gmra.mrb[0].mxu0 %v593
      %v696 = vpop.f32.mrb[0].mxu0
      %v697 = vadd.f32 0.0, %v696
      %v698 = vpop.f32.mrb[0].mxu0
      %699 = vdwg.mxu0
      %vm700 = vcmask 7168
      %701 = vst.msk [vmem:[%s325] sm:$0xff] %vm700, %v662
      %702 = vst.msk [vmem:[%s325 + $0x8] sm:$0xff] %vm700, %v667
      %703 = vst.msk [vmem:[%s325 + $0x10] sm:$0xff] %vm700, %v672
      %704 = vst.msk [vmem:[%s325 + $0x18] sm:$0xff] %vm700, %v677
      %705 = vst.msk [vmem:[%s325 + $0x20] sm:$0xff] %vm700, %v682
      %706 = vst.msk [vmem:[%s325 + $0x28] sm:$0xff] %vm700, %v687
      %707 = vst.msk [vmem:[%s325 + $0x30] sm:$0xff] %vm700, %v692
      %708 = vst.msk [vmem:[%s325 + $0x38] sm:$0xff] %vm700, %v697
      %v709 = vmul.f32 %v493, %v493
      %v710 = vmul.f32 %v496, %v496
      %v711 = vmul.f32 %v501, %v501
      %v712 = vmul.f32 %v504, %v504
      %v713 = vmul.f32 %v509, %v509
      %v714 = vmul.f32 %v512, %v512
      %v715 = vmul.f32 %v517, %v517
      %v716 = vmul.f32 %v520, %v520
      %v718 = vsel %vm570, %v709, 0
      %v721 = vsel %vm570, %v710, 0
      %v724 = vsel %vm570, %v711, 0
      %v727 = vsel %vm570, %v712, 0
      %v730 = vsel %vm570, %v713, 0
      %v733 = vsel %vm570, %v714, 0
      %v736 = vsel %vm570, %v715, 0
      %v739 = vsel %vm570, %v716, 0
      %741 = vmatprep.subr.mxu0 0.0
      %742 = vmatpush1.msra.mxu0 %v564
      %743 = vmatprep.subr.mxu0 0.0
      %744 = vmatpush1.msra.mxu0 %v565
      %745 = vmatprep.subr.mxu0 0.0
      %746 = vmatpush1.msra.mxu0 %v566
      %747 = vmatprep.subr.mxu0 0.0
      %748 = vmatpush1.msra.mxu0 %v567
      %749 = vmatprep.subr.mxu0 0.0
      %750 = vmatpush1.msra.mxu0 %v568
      %751 = vmatprep.subr.mxu0 0.0
      %752 = vmatpush1.msra.mxu0 %v569
      %753 = vmatprep.subr.mxu0 0.0
      %754 = vmatpush1.msra.mxu0 0.0
      %755 = vmatprep.subr.mxu0 0.0
      %756 = vmatpush1.msra.mxu0 0.0
      %757 = vmatprep.subr.mxu0 0.0
      %758 = vmatpush1.msra.mxu0 0.0
      %759 = vmatprep.subr.mxu0 0.0
      %760 = vmatpush1.msra.mxu0 0.0
      %761 = vmatprep.subr.mxu0 0.0
      %762 = vmatpush1.msra.mxu0 0.0
      %763 = vmatprep.subr.mxu0 0.0
      %764 = vmatpush1.msra.mxu0 0.0
      %765 = vmatprep.subr.mxu0 0.0
      %766 = vmatpush1.msra.mxu0 0.0
      %767 = vmatprep.subr.mxu0 0.0
      %768 = vmatpush1.msra.mxu0 0.0
      %769 = vmatprep.subr.mxu0 0.0
      %770 = vmatpush1.msra.mxu0 0.0
      %771 = vmatprep.subr.mxu0 0.0
      %772 = vmatpush1.msra.mxu0 0.0
      %773 = vmatprep.subr.mxu0 0.0
      %774 = vmatpush1.msra.mxu0 0.0
      %775 = vmatprep.subr.mxu0 0.0
      %776 = vmatpush1.msra.mxu0 0.0
      %777 = vmatprep.subr.mxu0 0.0
      %778 = vmatpush1.msra.mxu0 0.0
      %779 = vmatprep.subr.mxu0 0.0
      %780 = vmatpush1.msra.mxu0 0.0
      %781 = vmatprep.subr.mxu0 0.0
      %782 = vmatpush1.msra.mxu0 0.0
      %783 = vmatprep.subr.mxu0 0.0
      %784 = vmatpush1.msra.mxu0 0.0
      %785 = vmatprep.subr.mxu0 0.0
      %786 = vmatpush1.msra.mxu0 0.0
      %787 = vmatprep.subr.mxu0 0.0
      %788 = vmatpush1.msra.mxu0 0.0
      %789 = vmatprep.subr.mxu0 0.0
      %790 = vmatpush1.msra.mxu0 0.0
      %791 = vmatprep.subr.mxu0 0.0
      %792 = vmatpush1.msra.mxu0 0.0
      %793 = vmatprep.subr.mxu0 0.0
      %794 = vmatpush1.msra.mxu0 0.0
      %795 = vmatprep.subr.mxu0 0.0
      %796 = vmatpush1.msra.mxu0 0.0
      %797 = vmatprep.subr.mxu0 0.0
      %798 = vmatpush1.msra.mxu0 0.0
      %799 = vmatprep.subr.mxu0 0.0
      %800 = vmatpush1.msra.mxu0 0.0
      %801 = vmatprep.subr.mxu0 0.0
      %802 = vmatpush1.msra.mxu0 0.0
      %803 = vmatprep.subr.mxu0 0.0
      %804 = vmatpush1.msra.mxu0 0.0
      %805 = vmatprep.mubr.f32.mxu0 0.0
      %806 = vmatmul.mubr.f32.gmra.mrb[0].mxu0 %v718
      %v807 = vpop.f32.mrb[0].mxu0
      %v808 = vadd.f32 0.0, %v807
      %v809 = vpop.f32.mrb[0].mxu0
      %810 = vmatprep.mubr.f32.mxu0 0.0
      %811 = vmatmul.mubr.f32.gmra.mrb[0].mxu0 %v721
      %v812 = vpop.f32.mrb[0].mxu0
      %v813 = vadd.f32 0.0, %v812
      %v814 = vpop.f32.mrb[0].mxu0
      %815 = vmatprep.mubr.f32.mxu0 0.0
      %816 = vmatmul.mubr.f32.gmra.mrb[0].mxu0 %v724
      %v817 = vpop.f32.mrb[0].mxu0
      %v818 = vadd.f32 0.0, %v817
      %v819 = vpop.f32.mrb[0].mxu0
      %820 = vmatprep.mubr.f32.mxu0 0.0
      %821 = vmatmul.mubr.f32.gmra.mrb[0].mxu0 %v727
      %v822 = vpop.f32.mrb[0].mxu0
      %v823 = vadd.f32 0.0, %v822
      %v824 = vpop.f32.mrb[0].mxu0
      %825 = vmatprep.mubr.f32.mxu0 0.0
      %826 = vmatmul.mubr.f32.gmra.mrb[0].mxu0 %v730
      %v827 = vpop.f32.mrb[0].mxu0
      %v828 = vadd.f32 0.0, %v827
      %v829 = vpop.f32.mrb[0].mxu0
      %830 = vmatprep.mubr.f32.mxu0 0.0
      %831 = vmatmul.mubr.f32.gmra.mrb[0].mxu0 %v733
      %v832 = vpop.f32.mrb[0].mxu0
      %v833 = vadd.f32 0.0, %v832
      %v834 = vpop.f32.mrb[0].mxu0
      %835 = vmatprep.mubr.f32.mxu0 0.0
      %836 = vmatmul.mubr.f32.gmra.mrb[0].mxu0 %v736
      %v837 = vpop.f32.mrb[0].mxu0
      %v838 = vadd.f32 0.0, %v837
      %v839 = vpop.f32.mrb[0].mxu0
      %840 = vmatprep.mubr.f32.mxu0 0.0
      %841 = vmatmul.mubr.f32.gmra.mrb[0].mxu0 %v739
      %v842 = vpop.f32.mrb[0].mxu0
      %v843 = vadd.f32 0.0, %v842
      %v844 = vpop.f32.mrb[0].mxu0
      %845 = vdwg.mxu0
      %846 = vst.msk [vmem:[%s330] sm:$0xff] %vm700, %v808
      %847 = vst.msk [vmem:[%s330 + $0x8] sm:$0xff] %vm700, %v813
      %848 = vst.msk [vmem:[%s330 + $0x10] sm:$0xff] %vm700, %v818
      %849 = vst.msk [vmem:[%s330 + $0x18] sm:$0xff] %vm700, %v823
      %850 = vst.msk [vmem:[%s330 + $0x20] sm:$0xff] %vm700, %v828
      %851 = vst.msk [vmem:[%s330 + $0x28] sm:$0xff] %vm700, %v833
      %852 = vst.msk [vmem:[%s330 + $0x30] sm:$0xff] %vm700, %v838
      %853 = vst.msk [vmem:[%s330 + $0x38] sm:$0xff] %vm700, %v843
      %p854 = scmp.lt.s32.totalorder %s20, 1
      %s855 = scalar_select %p854, %s20, 1
      %s856 = smul.addr %s855, 8
      %s857 = smul.addr %s856, 4
      %s858 = scalar_lea.vmem %s6, %s857
      %p859 = scmp.lt.s32.totalorder %s20, 1
      %s860 = scalar_select %p859, %s20, 1
      %s861 = smul.addr %s860, 8
      %s862 = smul.addr %s861, 8
      %s863 = scalar_lea.vmem %s7, %s862
      %p864 = scmp.lt.s32.totalorder %s20, 1
      %s865 = scalar_select %p864, %s20, 1
      %s866 = smul.addr %s865, 8
      %s867 = smul.addr %s866, 8
      %s868 = scalar_lea.vmem %s8, %s867
      // Predicated region
      $region45: #{tpu_custom_call.1} parent=43 // pred_check
        %p869 = pneg %p169
      $region46: #{tpu_custom_call.1} parent=43 // pred_check_branch
        %871 = sbr.rel (%p869) target = $region48
      $region47: #{tpu_custom_call.1} parent=43 // pred_region
        _
      $region48: #{tpu_custom_call.1} parent=43 // pred_fallthru
        _
      // Predicated region
      $region49: #{tpu_custom_call.1} parent=43 // pred_check
        %p872 = pneg %p195
      $region50: #{tpu_custom_call.1} parent=43 // pred_check_branch
        %874 = sbr.rel (%p872) target = $region52
      $region51: #{tpu_custom_call.1} parent=43 // pred_region
        _
      $region52: #{tpu_custom_call.1} parent=43 // pred_fallthru
        _
      // Predicated region
      $region53: #{tpu_custom_call.1} parent=43 // pred_check
        %p875 = pneg %p221
      $region54: #{tpu_custom_call.1} parent=43 // pred_check_branch
        %877 = sbr.rel (%p875) target = $region56
      $region55: #{tpu_custom_call.1} parent=43 // pred_region
        _
      $region56: #{tpu_custom_call.1} parent=43 // pred_fallthru
        _
    $region44: #{tpu_custom_call.1} parent=5 // pred_fallthru
      _
    %p878 = scmp.le.s32.totalorder 2, %s15
    // Predicated region
    $region57: #{tpu_custom_call.1} parent=5 // pred_check
      %p879 = pneg %p878
    $region58: #{tpu_custom_call.1} parent=5 // pred_check_branch
      %881 = sbr.rel (%p879) target = $region60
    $region59: #{tpu_custom_call.1} parent=5 // pred_region
      %s882 = ssub.s32 %s15, 2
      // Predicated region
      $region61: #{tpu_custom_call.1} parent=59 // pred_check
        %p883 = pneg %p175
      $region62: #{tpu_custom_call.1} parent=59 // pred_check_branch
        %885 = sbr.rel (%p883) target = $region64
      $region63: #{tpu_custom_call.1} parent=59 // pred_region
        %p886 = scmp.lt.s32.totalorder %s21, 1
        %s887 = scalar_select %p886, %s21, 1
        %s888 = smul.addr %s887, 8
        %s889 = smul.addr %s888, 4
        %s890 = scalar_lea.vmem %s6, %s889
      $region64: #{tpu_custom_call.1} parent=59 // pred_fallthru
        _
      // Predicated region
      $region65: #{tpu_custom_call.1} parent=59 // pred_check
        %p891 = pneg %p201
      $region66: #{tpu_custom_call.1} parent=59 // pred_check_branch
        %893 = sbr.rel (%p891) target = $region68
      $region67: #{tpu_custom_call.1} parent=59 // pred_region
        %p894 = scmp.lt.s32.totalorder %s21, 1
        %s895 = scalar_select %p894, %s21, 1
        %s896 = smul.addr %s895, 8
        %s897 = smul.addr %s896, 8
        %s898 = scalar_lea.vmem %s7, %s897
      $region68: #{tpu_custom_call.1} parent=59 // pred_fallthru
        _
      // Predicated region
      $region69: #{tpu_custom_call.1} parent=59 // pred_check
        %p899 = pneg %p227
      $region70: #{tpu_custom_call.1} parent=59 // pred_check_branch
        %901 = sbr.rel (%p899) target = $region72
      $region71: #{tpu_custom_call.1} parent=59 // pred_region
        %p902 = scmp.lt.s32.totalorder %s21, 1
        %s903 = scalar_select %p902, %s21, 1
        %s904 = smul.addr %s903, 8
        %s905 = smul.addr %s904, 8
        %s906 = scalar_lea.vmem %s8, %s905
      $region72: #{tpu_custom_call.1} parent=59 // pred_fallthru
        _
    $region60: #{tpu_custom_call.1} parent=5 // pred_fallthru
      _
  $region6: #{tpu_custom_call.1} parent=0 // loop_footer
    %s19 = sadd.s32 1, %s15
  $region7: #{tpu_custom_call.1} parent=0 // loop_footer_branch
    %14 = sbr.rel target = $region3
  $region8: #{tpu_custom_call.1} parent=0 // loop_exit
    _

</llo_original>
